<compile_context>
chip_gen: v7x
topology: tpu7x:2x2x1
jax: 0.10.0
libtpu: 0.0.40
codegen_flags: <defaults>
</compile_context>

<pallas_src>
import functools

import jax
import jax.numpy as jnp
from jax import lax
from jax.experimental import pallas as pl
from jax.experimental.pallas import tpu as pltpu

KH = KW = 3  # VGG 3x3 conv, padding=1, stride=1


def _conv_relu_sigmoid_kernel(x_ref, w_ref, b_ref, o_ref, *, img_w):
    """One (batch, row-tile) step of fused conv3x3 + bias + ReLU + Sigmoid.

    x_ref: (1, 1, KW*Cin, (TR+2)*W)  width-shifted input slab with 2-row halo
    w_ref: (KH, Cout, KW*Cin)        conv weight: one (Cout, 9) matrix per kh
    b_ref: (Cout, 1)                 bias (broadcasts over lanes)
    o_ref: (1, Cout, TR*W)           lane-dense output tile (already CHW order)
    """
    tl = o_ref.shape[2]  # TR * W
    acc = None
    for kh in range(KH):
        # Row tap kh is a static lane-offset slice into the halo'd slab; the
        # kw and channel taps are already stacked along the 9 sublane rows.
        x_s = x_ref[0, 0, :, pl.ds(kh * img_w, tl)]            # (KW*Cin, TL)
        part = jnp.dot(w_ref[kh], x_s,
                       preferred_element_type=jnp.float32)     # MXU, K = 9
        acc = part if acc is None else acc + part
    acc = acc + b_ref[...]                                     # bias
    acc = jnp.maximum(acc, 0.0)                                # ReLU
    # Sigmoid: exp + approximate reciprocal run on the (otherwise idle) EUP;
    # one Newton step restores ~f32 accuracy without an f32 divide.
    denom = 1.0 + jnp.exp(-acc)
    inv = pl.reciprocal(denom, approx=True)
    inv = inv * (2.0 - denom * inv)
    o_ref[0] = inv.astype(o_ref.dtype)


def _choose_tile_rows(h, w, max_lanes=8192):
    """Largest TR dividing h with (TR*w) % 128 == 0 and TR*w <= max_lanes.

    Falls back to TR = h (single spatial tile: the block's last dim then
    equals the full array dim, which Pallas also accepts).
    """
    best = None
    for tr in range(1, h + 1):
        if h % tr:
            continue
        if tr * w > max_lanes:
            break
        if (tr * w) % 128 == 0:
            best = tr
    return best if best is not None else h


def simple_extractor_forward(x_nchw, weight_oihw, bias, *, tile_rows=None):
    """Pallas implementation of SimpleExtractor('vgg11', layer=2).forward."""
    N, Cin, H, W = x_nchw.shape
    Cout = weight_oihw.shape[0]
    K9 = KW * Cin

    TR = _choose_tile_rows(H, W) if tile_rows is None else int(tile_rows)
    assert H % TR == 0, (H, TR)
    TL = TR * W
    assert TL % 128 == 0 or TR == H, (TR, W)
    T = H // TR

    # ---- glue (layout only): pad, width-shifted copies, per-tile halo slabs.
    xpad = jnp.pad(x_nchw, ((0, 0), (0, 0), (1, 1), (1, 1)))   # (N,Cin,H+2,W+2)
    xw = jnp.stack([xpad[:, :, :, kw:kw + W] for kw in range(KW)],
                   axis=1)                                      # (N,KW,Cin,H+2,W)
    xt = jnp.stack([xw[:, :, :, t * TR:t * TR + TR + 2, :] for t in range(T)],
                   axis=1)                                      # (N,T,KW,Cin,TR+2,W)
    xt = xt.reshape(N, T, K9, (TR + 2) * W)
    # (Cout,Cin,KH,KW) -> (KH, Cout, KW*Cin); row order (kw, c) matches xt rows.
    wk = jnp.transpose(weight_oihw, (2, 0, 3, 1)).reshape(KH, Cout, K9)
    b2 = bias.reshape(Cout, 1)

    # ---- hot path: Pallas kernel over the (batch, row-tile) grid.
    out = pl.pallas_call(
        functools.partial(_conv_relu_sigmoid_kernel, img_w=W),
        out_shape=jax.ShapeDtypeStruct((N, Cout, H * W), x_nchw.dtype),
        grid_spec=pltpu.PrefetchScalarGridSpec(
            num_scalar_prefetch=0,
            grid=(N, T),
            in_specs=[
                pl.BlockSpec((1, 1, K9, (TR + 2) * W),
                             lambda n, t: (n, t, 0, 0)),
                pl.BlockSpec((KH, Cout, K9), lambda n, t: (0, 0, 0)),
                pl.BlockSpec((Cout, 1), lambda n, t: (0, 0)),
            ],
            out_specs=pl.BlockSpec((1, Cout, TL), lambda n, t: (n, 0, t)),
        ),
        compiler_params=pltpu.CompilerParams(
            dimension_semantics=("parallel", "parallel"),
            vmem_limit_bytes=32 * 1024 * 1024,
        ),
    )(xt, wk, b2)

    # out[n, c, h*W + w] is already the NCHW-flattened feature order.
    return out.reshape(N, -1)


def _reference_forward(x_nchw, weight_oihw, bias):
    """Pure-JAX reference (mirrors the PyTorch module) for correctness check."""
    y = lax.conv_general_dilated(
        x_nchw, weight_oihw, window_strides=(1, 1),
        padding=((1, 1), (1, 1)),
        dimension_numbers=("NCHW", "OIHW", "NCHW"))
    y = y + bias[None, :, None, None]
    y = jnp.maximum(y, 0.0)
    y = 1.0 / (1.0 + jnp.exp(-y))
    return y.reshape(y.shape[0], -1)


if __name__ == "__main__":
    key = jax.random.PRNGKey(0)
    k_x, k_w, k_b = jax.random.split(key, 3)

    N, Cin, H, W = 2, 3, 16, 16      # small input consistent with vgg11's first conv
    Cout = 64

    x = jax.random.normal(k_x, (N, Cin, H, W), dtype=jnp.float32)
    # deterministic synthetic "pretrained" parameters
    weight = 0.1 * jax.random.normal(k_w, (Cout, Cin, KH, KW), dtype=jnp.float32)
    bias = 0.05 * jax.random.normal(k_b, (Cout,), dtype=jnp.float32)

    ref = _reference_forward(x, weight, bias)

    # auto tiling (single spatial tile at this size) and an explicitly tiled
    # run (grid = (N, 2)) to exercise the spatial grid axis.
    out_auto = jax.block_until_ready(simple_extractor_forward(x, weight, bias))
    out_tiled = jax.block_until_ready(
        simple_extractor_forward(x, weight, bias, tile_rows=8))

    assert out_auto.shape == (N, Cout * H * W), out_auto.shape
    assert out_tiled.shape == (N, Cout * H * W), out_tiled.shape
    for out in (out_auto, out_tiled):
        err = float(jnp.max(jnp.abs(out - ref)))
        assert jnp.allclose(out, ref, atol=2e-5, rtol=2e-5), err

    print("KERNEL_OK")
</pallas_src>

<mosaic_0001>
module attributes {stable_mosaic.version = 11 : i64} {
  func.func @_conv_relu_sigmoid_kernel(%arg0: i32, %arg1: i32, %arg2: memref<1x1x9x288xf32, #tpu.memory_space<vmem>>, %arg3: memref<3x64x9xf32, #tpu.memory_space<vmem>>, %arg4: memref<64x1xf32, #tpu.memory_space<vmem>>, %arg5: memref<1x64x256xf32, #tpu.memory_space<vmem>>) attributes {dimension_semantics = [#tpu.dimension_semantics<parallel>, #tpu.dimension_semantics<parallel>], iteration_bounds = array<i64: 2, 1>, scalar_prefetch = 0 : i64, scratch_operands = 0 : i64, tpu.core_type = #tpu.core_type<tc>, window_params = [{transform_indices = @transform_0, window_bounds = array<i64: 1, 1, 9, 288>}, {pipeline_mode = #tpu.pipeline_mode<synchronous>, transform_indices = @transform_1, window_bounds = array<i64: 3, 64, 9>}, {pipeline_mode = #tpu.pipeline_mode<synchronous>, transform_indices = @transform_2, window_bounds = array<i64: 64, 1>}, {transform_indices = @transform_3, window_bounds = array<i64: 1, 64, 256>}]} {
    %c0 = arith.constant 0 : index
    %c0_0 = arith.constant 0 : index
    %c0_1 = arith.constant 0 : index
    %c0_2 = arith.constant 0 : index
    %0 = vector.load %arg2[%c0, %c0_0, %c0_1, %c0_2] : memref<1x1x9x288xf32, #tpu.memory_space<vmem>>, vector<1x1x9x256xf32>
    %1 = vector.shape_cast %0 : vector<1x1x9x256xf32> to vector<9x256xf32>
    %c0_3 = arith.constant 0 : index
    %c0_4 = arith.constant 0 : index
    %c0_5 = arith.constant 0 : index
    %2 = vector.load %arg3[%c0_3, %c0_4, %c0_5] : memref<3x64x9xf32, #tpu.memory_space<vmem>>, vector<1x64x9xf32>
    %3 = vector.shape_cast %2 : vector<1x64x9xf32> to vector<64x9xf32>
    %cst = arith.constant dense<0.000000e+00> : vector<64x256xf32>
    %4 = tpu.matmul %3, %1, %cst {dimension_numbers = #tpu.dot_dimension_numbers<[1], [0], [0], [1], [0, 0, 1, 1], [], []>} : vector<64x9xf32>, vector<9x256xf32>, vector<64x256xf32> -> vector<64x256xf32>
    %c0_6 = arith.constant 0 : index
    %c0_7 = arith.constant 0 : index
    %c0_8 = arith.constant 0 : index
    %c16 = arith.constant 16 : index
    %5 = vector.load %arg2[%c0_6, %c0_7, %c0_8, %c16] : memref<1x1x9x288xf32, #tpu.memory_space<vmem>>, vector<1x1x9x256xf32>
    %6 = vector.shape_cast %5 : vector<1x1x9x256xf32> to vector<9x256xf32>
    %c1 = arith.constant 1 : index
    %c0_9 = arith.constant 0 : index
    %c0_10 = arith.constant 0 : index
    %7 = vector.load %arg3[%c1, %c0_9, %c0_10] : memref<3x64x9xf32, #tpu.memory_space<vmem>>, vector<1x64x9xf32>
    %8 = vector.shape_cast %7 : vector<1x64x9xf32> to vector<64x9xf32>
    %cst_11 = arith.constant dense<0.000000e+00> : vector<64x256xf32>
    %9 = tpu.matmul %8, %6, %cst_11 {dimension_numbers = #tpu.dot_dimension_numbers<[1], [0], [0], [1], [0, 0, 1, 1], [], []>} : vector<64x9xf32>, vector<9x256xf32>, vector<64x256xf32> -> vector<64x256xf32>
    %10 = arith.addf %4, %9 : vector<64x256xf32>
    %c0_12 = arith.constant 0 : index
    %c0_13 = arith.constant 0 : index
    %c0_14 = arith.constant 0 : index
    %c32 = arith.constant 32 : index
    %11 = vector.load %arg2[%c0_12, %c0_13, %c0_14, %c32] : memref<1x1x9x288xf32, #tpu.memory_space<vmem>>, vector<1x1x9x256xf32>
    %12 = vector.shape_cast %11 : vector<1x1x9x256xf32> to vector<9x256xf32>
    %c2 = arith.constant 2 : index
    %c0_15 = arith.constant 0 : index
    %c0_16 = arith.constant 0 : index
    %13 = vector.load %arg3[%c2, %c0_15, %c0_16] : memref<3x64x9xf32, #tpu.memory_space<vmem>>, vector<1x64x9xf32>
    %14 = vector.shape_cast %13 : vector<1x64x9xf32> to vector<64x9xf32>
    %cst_17 = arith.constant dense<0.000000e+00> : vector<64x256xf32>
    %15 = tpu.matmul %14, %12, %cst_17 {dimension_numbers = #tpu.dot_dimension_numbers<[1], [0], [0], [1], [0, 0, 1, 1], [], []>} : vector<64x9xf32>, vector<9x256xf32>, vector<64x256xf32> -> vector<64x256xf32>
    %16 = arith.addf %10, %15 : vector<64x256xf32>
    %c0_18 = arith.constant 0 : index
    %c0_19 = arith.constant 0 : index
    %17 = vector.load %arg4[%c0_18, %c0_19] : memref<64x1xf32, #tpu.memory_space<vmem>>, vector<64x1xf32>
    %18 = vector.broadcast %17 : vector<64x1xf32> to vector<64x256xf32>
    %19 = arith.addf %16, %18 : vector<64x256xf32>
    %cst_20 = arith.constant 0.000000e+00 : f32
    %20 = vector.broadcast %cst_20 : f32 to vector<64x256xf32>
    %21 = arith.maximumf %19, %20 : vector<64x256xf32>
    %cst_21 = arith.constant 0.000000e+00 : f32
    %22 = vector.broadcast %cst_21 : f32 to vector<64x256xf32>
    %23 = arith.subf %22, %21 : vector<64x256xf32>
    %24 = math.exp %23 : vector<64x256xf32>
    %cst_22 = arith.constant 1.000000e+00 : f32
    %25 = vector.broadcast %cst_22 : f32 to vector<64x256xf32>
    %26 = arith.addf %25, %24 : vector<64x256xf32>
    %27 = tpu.reciprocal %26 {approx = true} : vector<64x256xf32> -> vector<64x256xf32>
    %28 = arith.mulf %26, %27 : vector<64x256xf32>
    %cst_23 = arith.constant 2.000000e+00 : f32
    %29 = vector.broadcast %cst_23 : f32 to vector<64x256xf32>
    %30 = arith.subf %29, %28 : vector<64x256xf32>
    %31 = arith.mulf %27, %30 : vector<64x256xf32>
    %c0_24 = arith.constant 0 : index
    %c0_25 = arith.constant 0 : index
    %c0_26 = arith.constant 0 : index
    %32 = vector.load %arg5[%c0_24, %c0_25, %c0_26] : memref<1x64x256xf32, #tpu.memory_space<vmem>>, vector<1x64x256xf32>
    %33 = vector.shape_cast %32 : vector<1x64x256xf32> to vector<64x256xf32>
    %34 = vector.shape_cast %31 : vector<64x256xf32> to vector<1x64x256xf32>
    tpu.vector_store %arg5[%c0_24, %c0_25, %c0_26], %34 {strides = array<i32>} : memref<1x64x256xf32, #tpu.memory_space<vmem>>, vector<1x64x256xf32>,
    return
  }
  func.func @transform_0(%arg0: i32, %arg1: i32) -> (i32, i32, i32, i32) {
    %c0_i32 = arith.constant 0 : i32
    %c0_i32_0 = arith.constant 0 : i32
    %c0_i32_1 = arith.constant 0 : i32
    return %arg0, %arg1, %c0_i32, %c0_i32_0 : i32, i32, i32, i32
  }
  func.func @transform_1(%arg0: i32, %arg1: i32) -> (i32, i32, i32) {
    %c0_i32 = arith.constant 0 : i32
    %c0_i32_0 = arith.constant 0 : i32
    %c0_i32_1 = arith.constant 0 : i32
    %c0_i32_2 = arith.constant 0 : i32
    return %c0_i32, %c0_i32_0, %c0_i32_1 : i32, i32, i32
  }
  func.func @transform_2(%arg0: i32, %arg1: i32) -> (i32, i32) {
    %c0_i32 = arith.constant 0 : i32
    %c0_i32_0 = arith.constant 0 : i32
    %c0_i32_1 = arith.constant 0 : i32
    return %c0_i32, %c0_i32_0 : i32, i32
  }
  func.func @transform_3(%arg0: i32, %arg1: i32) -> (i32, i32, i32) {
    %c0_i32 = arith.constant 0 : i32
    %c0_i32_0 = arith.constant 0 : i32
    return %arg0, %c0_i32, %arg1 : i32, i32, i32
  }
}

</mosaic_0001>

<llo_original>
// kernel: tpu_custom_call.1
$region0: #{tpu_custom_call.1}
  #allocation0 [shape = 'u32[]', space=smem, size = 0x4, offset = 0x4, fixed_abs, tag = 'smem constant byte address 0x4 - core index']
  #allocation1 [shape = 'u32[144,128]{1,0:T(1,128)}', space=vmem, size = 0x12000, scoped, tag = 'internal scratch']
  %s0 = inlined_call_operand.vmem [shape: f32[2,1,9,288], index: 0, kind: input, shape index: {}]
  %s1 = inlined_call_operand.vmem [shape: f32[3,64,9], index: 1, kind: input, shape index: {}]
  %s2 = inlined_call_operand.vmem [shape: f32[64,1], index: 2, kind: input, shape index: {}]
  %s3 = inlined_call_operand.hbm [shape: f32[2,64,256], index: 3, kind: output, shape index: {}]
  %s4 = sld [smem:[#allocation0]]
  $region45: #{tpu_custom_call.1} parent=0
    _
  %s6 = ssub.s32 1, %s4
  %s7 = scalar_select 0, %s6, %s4
  $region1: #{tpu_custom_call.1} parent=0
    #allocation2 [shape = 'u8[131072]{0}', space=vmem, size = 0x20000, scoped, tag = 'output window, operand 0']
    #allocation3 [shape = 's32[2]{0}', space=sflag, size = 0x8, scoped, tag = 'scoped memory for tpu_custom_call.1']
    %8 = vsyncpa [#allocation3], 0
    %s9 = scalar_lea.sflag [#allocation3], 1
    %10 = vsyncpa %s9, 0
    loop: start=0, step=1, limit=4
    $region2: #{tpu_custom_call.1} parent=1 // loop_pre_header
      _
    $region3: #{tpu_custom_call.1} parent=1 // loop_header
      %s12 = sphi 0, %s16
      %p13 = scmp.ge.s32.totalorder %s12, 4
      %s19 = sphi 0, %s31
      %s20 = sphi 0, %s27
      %s21 = sphi 0, %s19
      %s22 = sphi 0, %s20
      %s23 = sphi 0, %s21
      %s24 = sphi 0, %s22
      %s36 = sphi 0, %s38
      %s39 = sphi 0, %s36
      %s40 = sphi 0, %s39
      %s56 = sphi 0, %s40
      %s60 = sphi 0, %s60
      %s62 = sphi 0, %s60
      %s63 = sphi 0, %s62
      %s77 = sphi 0, %s63
      %s81 = sphi 0, %s81
      %s83 = sphi 0, %s81
      %s84 = sphi 0, %s83
      %s98 = sphi 0, %s84
      %s106 = sphi 0, %s108
      %s109 = sphi 0, %s106
      %s110 = sphi 0, %s109
      %s126 = sphi 0, %s110
    $region4: #{tpu_custom_call.1} parent=1 // loop_header_branch
      %15 = sbr.rel (%p13) target = $region8
    $region5: #{tpu_custom_call.1} parent=1 // loop_body
      %s17 = ssub.s32 %s12, 1
      %s18 = ssub.s32 %s12, 2
      %s25 = sadd.s32 1, %s20
      %p26 = scmp.ge.s32.totalorder %s25, 1
      %s27 = scalar_select %p26, 0, %s25
      %s28 = sadd.s32 1, %s19
      %s29 = scalar_select %p26, %s28, %s19
      %p30 = scmp.ge.s32.totalorder %s29, 2
      %s31 = scalar_select %p30, 0, %s29
      %s32 = ssub.s32 %s19, %s31
      %s33 = ssub.s32 %s20, %s27
      %s34 = sor.u32 %s32, %s33
      %p35 = scmp.eq.s32.totalorder %s34, 0
      %s37 = sadd.s32 %s36, 1
      %s38 = scalar_select %p35, %s36, %s37
      %p41 = pneg %p35
      %p42 = scmp.eq.s32.totalorder %s12, 1
      %p43 = por %p41, %p42
      %p44 = scmp.ne.s32.totalorder %s36, %s39
      %p45 = scmp.eq.s32.totalorder %s12, 0
      %p46 = por %p44, %p45
      %p47 = scmp.ne.s32.totalorder %s36, %s39
      %p48 = scmp.eq.s32.totalorder %s17, 1
      %p49 = por %p47, %p48
      %p50 = scmp.ne.s32.totalorder %s39, %s40
      %p51 = scmp.eq.s32.totalorder %s17, 0
      %p52 = por %p50, %p51
      %p53 = scmp.ne.s32.totalorder %s39, %s40
      %p54 = scmp.eq.s32.totalorder %s18, 1
      %p55 = por %p53, %p54
      %p57 = scmp.ne.s32.totalorder %s40, %s56
      %p58 = scmp.eq.s32.totalorder %s18, 0
      %p59 = por %p57, %p58
      %s61 = sadd.s32 %s60, 1
      %p64 = scmp.eq.s32.totalorder %s12, 1
      %p65 = scmp.ne.s32.totalorder %s60, %s62
      %p66 = scmp.eq.s32.totalorder %s12, 0
      %p67 = por %p65, %p66
      %p68 = scmp.ne.s32.totalorder %s60, %s62
      %p69 = scmp.eq.s32.totalorder %s17, 1
      %p70 = por %p68, %p69
      %p71 = scmp.ne.s32.totalorder %s62, %s63
      %p72 = scmp.eq.s32.totalorder %s17, 0
      %p73 = por %p71, %p72
      %p74 = scmp.ne.s32.totalorder %s62, %s63
      %p75 = scmp.eq.s32.totalorder %s18, 1
      %p76 = por %p74, %p75
      %p78 = scmp.ne.s32.totalorder %s63, %s77
      %p79 = scmp.eq.s32.totalorder %s18, 0
      %p80 = por %p78, %p79
      %s82 = sadd.s32 %s81, 1
      %p85 = scmp.eq.s32.totalorder %s12, 1
      %p86 = scmp.ne.s32.totalorder %s81, %s83
      %p87 = scmp.eq.s32.totalorder %s12, 0
      %p88 = por %p86, %p87
      %p89 = scmp.ne.s32.totalorder %s81, %s83
      %p90 = scmp.eq.s32.totalorder %s17, 1
      %p91 = por %p89, %p90
      %p92 = scmp.ne.s32.totalorder %s83, %s84
      %p93 = scmp.eq.s32.totalorder %s17, 0
      %p94 = por %p92, %p93
      %p95 = scmp.ne.s32.totalorder %s83, %s84
      %p96 = scmp.eq.s32.totalorder %s18, 1
      %p97 = por %p95, %p96
      %p99 = scmp.ne.s32.totalorder %s84, %s98
      %p100 = scmp.eq.s32.totalorder %s18, 0
      %p101 = por %p99, %p100
      %s102 = ssub.s32 %s19, %s31
      %s103 = ssub.s32 %s20, %s27
      %s104 = sor.u32 %s102, %s103
      %p105 = scmp.eq.s32.totalorder %s104, 0
      %s107 = sadd.s32 %s106, 1
      %s108 = scalar_select %p105, %s106, %s107
      %p111 = pneg %p105
      %p112 = scmp.eq.s32.totalorder %s12, 1
      %p113 = por %p111, %p112
      %p114 = scmp.ne.s32.totalorder %s106, %s109
      %p115 = scmp.eq.s32.totalorder %s12, 0
      %p116 = por %p114, %p115
      %p117 = scmp.ne.s32.totalorder %s106, %s109
      %p118 = scmp.eq.s32.totalorder %s17, 1
      %p119 = por %p117, %p118
      %p120 = scmp.ne.s32.totalorder %s109, %s110
      %p121 = scmp.eq.s32.totalorder %s17, 0
      %p122 = por %p120, %p121
      %p123 = scmp.ne.s32.totalorder %s109, %s110
      %p124 = scmp.eq.s32.totalorder %s18, 1
      %p125 = por %p123, %p124
      %p127 = scmp.ne.s32.totalorder %s110, %s126
      %p128 = scmp.eq.s32.totalorder %s18, 0
      %p129 = por %p127, %p128
      %p130 = scmp.le.s32.totalorder 1, %s12
      %p131 = scmp.lt.s32.totalorder %s12, 3
      %p132 = pnand %p130, %p131
      %p133 = pneg %p132
      // Predicated region
      $region9: #{tpu_custom_call.1} parent=5 // pred_check
        _
      $region10: #{tpu_custom_call.1} parent=5 // pred_check_branch
        %135 = sbr.rel (%p132) target = $region12
      $region11: #{tpu_custom_call.1} parent=5 // pred_region
        %s136 = ssub.s32 %s12, 1
        // Predicated region
        $region13: #{tpu_custom_call.1} parent=11 // pred_check
          %p137 = pneg %p73
        $region14: #{tpu_custom_call.1} parent=11 // pred_check_branch
          %139 = sbr.rel (%p137) target = $region16
        $region15: #{tpu_custom_call.1} parent=11 // pred_region
          _
        $region16: #{tpu_custom_call.1} parent=11 // pred_fallthru
          _
        // Predicated region
        $region17: #{tpu_custom_call.1} parent=11 // pred_check
          %p140 = pneg %p94
        $region18: #{tpu_custom_call.1} parent=11 // pred_check_branch
          %142 = sbr.rel (%p140) target = $region20
        $region19: #{tpu_custom_call.1} parent=11 // pred_region
          _
        $region20: #{tpu_custom_call.1} parent=11 // pred_fallthru
          _
      $region12: #{tpu_custom_call.1} parent=5 // pred_fallthru
        _
      %p143 = scmp.lt.s32.totalorder %s12, 2
      // Predicated region
      $region21: #{tpu_custom_call.1} parent=5 // pred_check
        %p144 = pneg %p143
      $region22: #{tpu_custom_call.1} parent=5 // pred_check_branch
        %146 = sbr.rel (%p144) target = $region24
      $region23: #{tpu_custom_call.1} parent=5 // pred_region
        // Predicated region
        $region25: #{tpu_custom_call.1} parent=23 // pred_check
          %p147 = pneg %p46
        $region26: #{tpu_custom_call.1} parent=23 // pred_check_branch
          %149 = sbr.rel (%p147) target = $region28
        $region27: #{tpu_custom_call.1} parent=23 // pred_region
          %p150 = scmp.lt.s32.totalorder %s19, 1
          %s151 = scalar_select %p150, %s19, 1
          %p152 = scmp.lt.s32.totalorder %s20, 0
          %s153 = scalar_select %p152, %s20, 0
          %s154 = smul.addr %s153, 6
          %s155 = smul.addr %s151, 6
          %s156 = sadd.s32 %s154, %s155
          %s157 = smul.addr %s156, 8
          %s158 = scalar_lea.vmem %s0, %s157
        $region28: #{tpu_custom_call.1} parent=23 // pred_fallthru
          _
      $region24: #{tpu_custom_call.1} parent=5 // pred_fallthru
        _
      %p159 = scmp.le.s32.totalorder 1, %s12
      %p160 = scmp.lt.s32.totalorder %s12, 3
      %p161 = pnand %p159, %p160
      %p162 = pneg %p161
      // Predicated region
      $region29: #{tpu_custom_call.1} parent=5 // pred_check
        _
      $region30: #{tpu_custom_call.1} parent=5 // pred_check_branch
        %164 = sbr.rel (%p161) target = $region32
      $region31: #{tpu_custom_call.1} parent=5 // pred_region
        %s165 = ssub.s32 %s12, 1
        %p166 = scmp.lt.s32.totalorder %s21, 1
        %s167 = scalar_select %p166, %s21, 1
        %p168 = scmp.lt.s32.totalorder %s22, 0
        %s169 = scalar_select %p168, %s22, 0
        %s170 = smul.addr %s169, 6
        %s171 = smul.addr %s167, 6
        %s172 = sadd.s32 %s170, %s171
        %s173 = smul.addr %s172, 8
        %s174 = scalar_lea.vmem %s0, %s173
        %p175 = pneg %p52
        %p176 = pneg %p49
        %p177 = pneg %p73
        %p178 = pneg %p70
        %p179 = pneg %p94
        %p180 = pneg %p91
        %p181 = pneg %p122
        %p182 = pneg %p119
        %s183 = sand.u32 %s109, 1
        %s184 = scalar_lea.sflag [#allocation3], %s183
        %s185 = sand.u32 %s109, 1
        %s186 = smul.addr %s185, 128
        %s187 = scalar_lea.vmem [#allocation2], %s186
        %p188 = scmp.lt.s32.totalorder %s21, 1
        %s189 = scalar_select %p188, %s21, 1
        %p190 = scmp.lt.s32.totalorder %s22, 0
        %s191 = scalar_select %p190, %s22, 0
        %s192 = smul.addr %s191, 6
        %s193 = smul.addr %s189, 6
        %s194 = sadd.s32 %s192, %s193
        %s195 = smul.addr %s194, 8
        %s196 = scalar_lea.vmem %s0, %s195
        %s197 = smul.u32 2, %s22
        %v198 = vld [vmem:[%s196] sm:$0xff]
        %v199 = vld [vmem:[%s196 + $0x8] sm:$0xff]
        %v200 = vld [vmem:[%s196 + $0x18] sm:$0x1]
        %v201 = vld [vmem:[%s196 + $0x20] sm:$0x1]
        %v202 = vld [vmem:[%s1] sm:$0xff]
        %v203 = vld [vmem:[%s1 + $0x8] sm:$0xff]
        %v204 = vld [vmem:[%s1 + $0x10] sm:$0xff]
        %v205 = vld [vmem:[%s1 + $0x18] sm:$0xff]
        %v206 = vld [vmem:[%s1 + $0x20] sm:$0xff]
        %v207 = vld [vmem:[%s1 + $0x28] sm:$0xff]
        %v208 = vld [vmem:[%s1 + $0x30] sm:$0xff]
        %v209 = vld [vmem:[%s1 + $0x38] sm:$0xff]
        %v210 = vld [vmem:[%s196 + $0x10] sm:$0xff]
        %v211 = vld [vmem:[%s196 + $0x28] sm:$0x1]
        %s212 = scalar_lea.vmem %s1, 64
        %v213 = vld [vmem:[%s212] sm:$0xff]
        %v214 = vld [vmem:[%s212 + $0x8] sm:$0xff]
        %v215 = vld [vmem:[%s212 + $0x10] sm:$0xff]
        %v216 = vld [vmem:[%s212 + $0x18] sm:$0xff]
        %v217 = vld [vmem:[%s212 + $0x20] sm:$0xff]
        %v218 = vld [vmem:[%s212 + $0x28] sm:$0xff]
        %v219 = vld [vmem:[%s212 + $0x30] sm:$0xff]
        %v220 = vld [vmem:[%s212 + $0x38] sm:$0xff]
        %227 = vrot.lane.b32.xlu0 %v198, 112
        %v228 = vpop.permute.xlu0 %227
        %229 = vrot.lane.b32.xlu0 %v199, 112
        %v230 = vpop.permute.xlu0 %229
        %231 = vrot.lane.b32.xlu0 %v210, 112
        %v232 = vpop.permute.xlu0 %231
        %233 = vrot.lane.b32.xlu0 %v200, 112
        %v234 = vpop.permute.xlu0 %233
        %235 = vrot.lane.b32.xlu0 %v201, 112
        %v236 = vpop.permute.xlu0 %235
        %237 = vrot.lane.b32.xlu0 %v211, 112
        %v238 = vpop.permute.xlu0 %237
        %vm239 = vcmask 916480
        %v240 = vsel %vm239, %v228, %v230
        %v241 = vsel %vm239, %v230, %v232
        %v242 = vsel %vm239, %v234, %v236
        %v243 = vsel %vm239, %v236, %v238
        %vm246 = vcmask 72704
        %v248 = vsel %vm246, %v213, 0
        %v251 = vsel %vm246, %v214, 0
        %v254 = vsel %vm246, %v215, 0
        %v257 = vsel %vm246, %v216, 0
        %v260 = vsel %vm246, %v217, 0
        %v263 = vsel %vm246, %v218, 0
        %v266 = vsel %vm246, %v219, 0
        %v269 = vsel %vm246, %v220, 0
        %vm271 = vcmask 1040384
        %v272 = vsel %vm271, %v242, 0
        %v274 = vsel %vm271, %v243, 0
        %276 = vmatprep.subr.mxu0 %v241
        %277 = vmatpush1.msra.mxu0 %v240
        %278 = vmatprep.subr.mxu0 %v274
        %279 = vmatpush1.msra.mxu0 %v272
        %280 = vmatprep.subr.mxu0 0.0
        %281 = vmatpush1.msra.mxu0 0.0
        %282 = vmatprep.subr.mxu0 0.0
        %283 = vmatpush1.msra.mxu0 0.0
        %284 = vmatprep.subr.mxu0 0.0
        %285 = vmatpush1.msra.mxu0 0.0
        %286 = vmatprep.subr.mxu0 0.0
        %287 = vmatpush1.msra.mxu0 0.0
        %288 = vmatprep.subr.mxu0 0.0
        %289 = vmatpush1.msra.mxu0 0.0
        %290 = vmatprep.subr.mxu0 0.0
        %291 = vmatpush1.msra.mxu0 0.0
        %292 = vmatprep.subr.mxu0 0.0
        %293 = vmatpush1.msra.mxu0 0.0
        %294 = vmatprep.subr.mxu0 0.0
        %295 = vmatpush1.msra.mxu0 0.0
        %296 = vmatprep.subr.mxu0 0.0
        %297 = vmatpush1.msra.mxu0 0.0
        %298 = vmatprep.subr.mxu0 0.0
        %299 = vmatpush1.msra.mxu0 0.0
        %300 = vmatprep.subr.mxu0 0.0
        %301 = vmatpush1.msra.mxu0 0.0
        %302 = vmatprep.subr.mxu0 0.0
        %303 = vmatpush1.msra.mxu0 0.0
        %304 = vmatprep.subr.mxu0 0.0
        %305 = vmatpush1.msra.mxu0 0.0
        %306 = vmatprep.subr.mxu0 0.0
        %307 = vmatpush1.msra.mxu0 0.0
        %308 = vmatprep.subr.mxu0 0.0
        %309 = vmatpush1.msra.mxu0 0.0
        %310 = vmatprep.subr.mxu0 0.0
        %311 = vmatpush1.msra.mxu0 0.0
        %312 = vmatprep.subr.mxu0 0.0
        %313 = vmatpush1.msra.mxu0 0.0
        %314 = vmatprep.subr.mxu0 0.0
        %315 = vmatpush1.msra.mxu0 0.0
        %316 = vmatprep.subr.mxu0 0.0
        %317 = vmatpush1.msra.mxu0 0.0
        %318 = vmatprep.subr.mxu0 0.0
        %319 = vmatpush1.msra.mxu0 0.0
        %320 = vmatprep.subr.mxu0 0.0
        %321 = vmatpush1.msra.mxu0 0.0
        %322 = vmatprep.subr.mxu0 0.0
        %323 = vmatpush1.msra.mxu0 0.0
        %324 = vmatprep.subr.mxu0 0.0
        %325 = vmatpush1.msra.mxu0 0.0
        %326 = vmatprep.subr.mxu0 0.0
        %327 = vmatpush1.msra.mxu0 0.0
        %328 = vmatprep.subr.mxu0 0.0
        %329 = vmatpush1.msra.mxu0 0.0
        %330 = vmatprep.subr.mxu0 0.0
        %331 = vmatpush1.msra.mxu0 0.0
        %332 = vmatprep.subr.mxu0 0.0
        %333 = vmatpush1.msra.mxu0 0.0
        %334 = vmatprep.subr.mxu0 0.0
        %335 = vmatpush1.msra.mxu0 0.0
        %336 = vmatprep.subr.mxu0 0.0
        %337 = vmatpush1.msra.mxu0 0.0
        %338 = vmatprep.subr.mxu0 0.0
        %339 = vmatpush1.msra.mxu0 0.0
        %340 = vmatprep.mubr.f32.mxu0 0.0
        %341 = vmatmul.mubr.f32.gmra.mrb[0].mxu0 %v248
        %v342 = vpop.f32.mrb[0].mxu0
        %v343 = vadd.f32 0.0, %v342
        %v344 = vpop.f32.mrb[0].mxu0
        %v345 = vadd.f32 0.0, %v344
        %346 = vmatprep.mubr.f32.mxu0 0.0
        %347 = vmatmul.mubr.f32.gmra.mrb[0].mxu0 %v251
        %v348 = vpop.f32.mrb[0].mxu0
        %v349 = vadd.f32 0.0, %v348
        %v350 = vpop.f32.mrb[0].mxu0
        %v351 = vadd.f32 0.0, %v350
        %352 = vmatprep.mubr.f32.mxu0 0.0
        %353 = vmatmul.mubr.f32.gmra.mrb[0].mxu0 %v254
        %v354 = vpop.f32.mrb[0].mxu0
        %v355 = vadd.f32 0.0, %v354
        %v356 = vpop.f32.mrb[0].mxu0
        %v357 = vadd.f32 0.0, %v356
        %358 = vmatprep.mubr.f32.mxu0 0.0
        %359 = vmatmul.mubr.f32.gmra.mrb[0].mxu0 %v257
        %v360 = vpop.f32.mrb[0].mxu0
        %v361 = vadd.f32 0.0, %v360
        %v362 = vpop.f32.mrb[0].mxu0
        %v363 = vadd.f32 0.0, %v362
        %364 = vmatprep.mubr.f32.mxu0 0.0
        %365 = vmatmul.mubr.f32.gmra.mrb[0].mxu0 %v260
        %v366 = vpop.f32.mrb[0].mxu0
        %v367 = vadd.f32 0.0, %v366
        %v368 = vpop.f32.mrb[0].mxu0
        %v369 = vadd.f32 0.0, %v368
        %370 = vmatprep.mubr.f32.mxu0 0.0
        %371 = vmatmul.mubr.f32.gmra.mrb[0].mxu0 %v263
        %v372 = vpop.f32.mrb[0].mxu0
        %v373 = vadd.f32 0.0, %v372
        %v374 = vpop.f32.mrb[0].mxu0
        %v375 = vadd.f32 0.0, %v374
        %376 = vmatprep.mubr.f32.mxu0 0.0
        %377 = vmatmul.mubr.f32.gmra.mrb[0].mxu0 %v266
        %v378 = vpop.f32.mrb[0].mxu0
        %v379 = vadd.f32 0.0, %v378
        %v380 = vpop.f32.mrb[0].mxu0
        %v381 = vadd.f32 0.0, %v380
        %382 = vmatprep.mubr.f32.mxu0 0.0
        %383 = vmatmul.mubr.f32.gmra.mrb[0].mxu0 %v269
        %v384 = vpop.f32.mrb[0].mxu0
        %v385 = vadd.f32 0.0, %v384
        %v386 = vpop.f32.mrb[0].mxu0
        %v387 = vadd.f32 0.0, %v386
        %388 = vdwg.mxu0
        %v390 = vsel %vm246, %v202, 0
        %v393 = vsel %vm246, %v203, 0
        %v396 = vsel %vm246, %v204, 0
        %v399 = vsel %vm246, %v205, 0
        %v402 = vsel %vm246, %v206, 0
        %v405 = vsel %vm246, %v207, 0
        %v408 = vsel %vm246, %v208, 0
        %v411 = vsel %vm246, %v209, 0
        %v413 = vsel %vm271, %v200, 0
        %v415 = vsel %vm271, %v201, 0
        %417 = vmatprep.subr.mxu0 %v199
        %418 = vmatpush1.msra.mxu0 %v198
        %419 = vmatprep.subr.mxu0 %v415
        %420 = vmatpush1.msra.mxu0 %v413
        %421 = vmatprep.subr.mxu0 0.0
        %422 = vmatpush1.msra.mxu0 0.0
        %423 = vmatprep.subr.mxu0 0.0
        %424 = vmatpush1.msra.mxu0 0.0
        %425 = vmatprep.subr.mxu0 0.0
        %426 = vmatpush1.msra.mxu0 0.0
        %427 = vmatprep.subr.mxu0 0.0
        %428 = vmatpush1.msra.mxu0 0.0
        %429 = vmatprep.subr.mxu0 0.0
        %430 = vmatpush1.msra.mxu0 0.0
        %431 = vmatprep.subr.mxu0 0.0
        %432 = vmatpush1.msra.mxu0 0.0
        %433 = vmatprep.subr.mxu0 0.0
        %434 = vmatpush1.msra.mxu0 0.0
        %435 = vmatprep.subr.mxu0 0.0
        %436 = vmatpush1.msra.mxu0 0.0
        %437 = vmatprep.subr.mxu0 0.0
        %438 = vmatpush1.msra.mxu0 0.0
        %439 = vmatprep.subr.mxu0 0.0
        %440 = vmatpush1.msra.mxu0 0.0
        %441 = vmatprep.subr.mxu0 0.0
        %442 = vmatpush1.msra.mxu0 0.0
        %443 = vmatprep.subr.mxu0 0.0
        %444 = vmatpush1.msra.mxu0 0.0
        %445 = vmatprep.subr.mxu0 0.0
        %446 = vmatpush1.msra.mxu0 0.0
        %447 = vmatprep.subr.mxu0 0.0
        %448 = vmatpush1.msra.mxu0 0.0
        %449 = vmatprep.subr.mxu0 0.0
        %450 = vmatpush1.msra.mxu0 0.0
        %451 = vmatprep.subr.mxu0 0.0
        %452 = vmatpush1.msra.mxu0 0.0
        %453 = vmatprep.subr.mxu0 0.0
        %454 = vmatpush1.msra.mxu0 0.0
        %455 = vmatprep.subr.mxu0 0.0
        %456 = vmatpush1.msra.mxu0 0.0
        %457 = vmatprep.subr.mxu0 0.0
        %458 = vmatpush1.msra.mxu0 0.0
        %459 = vmatprep.subr.mxu0 0.0
        %460 = vmatpush1.msra.mxu0 0.0
        %461 = vmatprep.subr.mxu0 0.0
        %462 = vmatpush1.msra.mxu0 0.0
        %463 = vmatprep.subr.mxu0 0.0
        %464 = vmatpush1.msra.mxu0 0.0
        %465 = vmatprep.subr.mxu0 0.0
        %466 = vmatpush1.msra.mxu0 0.0
        %467 = vmatprep.subr.mxu0 0.0
        %468 = vmatpush1.msra.mxu0 0.0
        %469 = vmatprep.subr.mxu0 0.0
        %470 = vmatpush1.msra.mxu0 0.0
        %471 = vmatprep.subr.mxu0 0.0
        %472 = vmatpush1.msra.mxu0 0.0
        %473 = vmatprep.subr.mxu0 0.0
        %474 = vmatpush1.msra.mxu0 0.0
        %475 = vmatprep.subr.mxu0 0.0
        %476 = vmatpush1.msra.mxu0 0.0
        %477 = vmatprep.subr.mxu0 0.0
        %478 = vmatpush1.msra.mxu0 0.0
        %479 = vmatprep.subr.mxu0 0.0
        %480 = vmatpush1.msra.mxu0 0.0
        %481 = vmatprep.mubr.f32.mxu0 0.0
        %482 = vmatmul.mubr.f32.gmra.mrb[0].mxu0 %v390
        %v483 = vpop.f32.mrb[0].mxu0
        %v484 = vadd.f32 %v343, %v483
        %v485 = vpop.f32.mrb[0].mxu0
        %v486 = vadd.f32 %v345, %v485
        %487 = vmatprep.mubr.f32.mxu0 0.0
        %488 = vmatmul.mubr.f32.gmra.mrb[0].mxu0 %v393
        %v489 = vpop.f32.mrb[0].mxu0
        %v490 = vadd.f32 %v349, %v489
        %v491 = vpop.f32.mrb[0].mxu0
        %v492 = vadd.f32 %v351, %v491
        %493 = vmatprep.mubr.f32.mxu0 0.0
        %494 = vmatmul.mubr.f32.gmra.mrb[0].mxu0 %v396
        %v495 = vpop.f32.mrb[0].mxu0
        %v496 = vadd.f32 %v355, %v495
        %v497 = vpop.f32.mrb[0].mxu0
        %v498 = vadd.f32 %v357, %v497
        %499 = vmatprep.mubr.f32.mxu0 0.0
        %500 = vmatmul.mubr.f32.gmra.mrb[0].mxu0 %v399
        %v501 = vpop.f32.mrb[0].mxu0
        %v502 = vadd.f32 %v361, %v501
        %v503 = vpop.f32.mrb[0].mxu0
        %v504 = vadd.f32 %v363, %v503
        %505 = vmatprep.mubr.f32.mxu0 0.0
        %506 = vmatmul.mubr.f32.gmra.mrb[0].mxu0 %v402
        %v507 = vpop.f32.mrb[0].mxu0
        %v508 = vadd.f32 %v367, %v507
        %v509 = vpop.f32.mrb[0].mxu0
        %v510 = vadd.f32 %v369, %v509
        %511 = vmatprep.mubr.f32.mxu0 0.0
        %512 = vmatmul.mubr.f32.gmra.mrb[0].mxu0 %v405
        %v513 = vpop.f32.mrb[0].mxu0
        %v514 = vadd.f32 %v373, %v513
        %v515 = vpop.f32.mrb[0].mxu0
        %v516 = vadd.f32 %v375, %v515
        %517 = vmatprep.mubr.f32.mxu0 0.0
        %518 = vmatmul.mubr.f32.gmra.mrb[0].mxu0 %v408
        %v519 = vpop.f32.mrb[0].mxu0
        %v520 = vadd.f32 %v379, %v519
        %v521 = vpop.f32.mrb[0].mxu0
        %v522 = vadd.f32 %v381, %v521
        %523 = vmatprep.mubr.f32.mxu0 0.0
        %524 = vmatmul.mubr.f32.gmra.mrb[0].mxu0 %v411
        %v525 = vpop.f32.mrb[0].mxu0
        %v526 = vadd.f32 %v385, %v525
        %v527 = vpop.f32.mrb[0].mxu0
        %v528 = vadd.f32 %v387, %v527
        %529 = vdwg.mxu0
        %s530 = scalar_lea.vmem %s1, 128
        %v531 = vld [vmem:[%s530] sm:$0xff]
        %v532 = vld [vmem:[%s530 + $0x8] sm:$0xff]
        %v533 = vld [vmem:[%s530 + $0x10] sm:$0xff]
        %v534 = vld [vmem:[%s530 + $0x18] sm:$0xff]
        %v535 = vld [vmem:[%s530 + $0x20] sm:$0xff]
        %v536 = vld [vmem:[%s530 + $0x28] sm:$0xff]
        %v537 = vld [vmem:[%s530 + $0x30] sm:$0xff]
        %v538 = vld [vmem:[%s530 + $0x38] sm:$0xff]
        %539 = vrot.lane.b32.xlu0 %v198, 96
        %v540 = vpop.permute.xlu0 %539
        %541 = vrot.lane.b32.xlu0 %v199, 96
        %v542 = vpop.permute.xlu0 %541
        %543 = vrot.lane.b32.xlu0 %v210, 96
        %v544 = vpop.permute.xlu0 %543
        %545 = vrot.lane.b32.xlu0 %v200, 96
        %v546 = vpop.permute.xlu0 %545
        %547 = vrot.lane.b32.xlu0 %v201, 96
        %v548 = vpop.permute.xlu0 %547
        %549 = vrot.lane.b32.xlu0 %v211, 96
        %v550 = vpop.permute.xlu0 %549
        %vm551 = vcmask 785408
        %v552 = vsel %vm551, %v540, %v542
        %v553 = vsel %vm551, %v542, %v544
        %v554 = vsel %vm551, %v546, %v548
        %v555 = vsel %vm551, %v548, %v550
        %v559 = vsel %vm246, %v531, 0
        %v562 = vsel %vm246, %v532, 0
        %v565 = vsel %vm246, %v533, 0
        %v568 = vsel %vm246, %v534, 0
        %v571 = vsel %vm246, %v535, 0
        %v574 = vsel %vm246, %v536, 0
        %v577 = vsel %vm246, %v537, 0
        %v580 = vsel %vm246, %v538, 0
        %v582 = vsel %vm271, %v554, 0
        %v584 = vsel %vm271, %v555, 0
        %586 = vmatprep.subr.mxu0 %v553
        %587 = vmatpush1.msra.mxu0 %v552
        %588 = vmatprep.subr.mxu0 %v584
        %589 = vmatpush1.msra.mxu0 %v582
        %590 = vmatprep.subr.mxu0 0.0
        %591 = vmatpush1.msra.mxu0 0.0
        %592 = vmatprep.subr.mxu0 0.0
        %593 = vmatpush1.msra.mxu0 0.0
        %594 = vmatprep.subr.mxu0 0.0
        %595 = vmatpush1.msra.mxu0 0.0
        %596 = vmatprep.subr.mxu0 0.0
        %597 = vmatpush1.msra.mxu0 0.0
        %598 = vmatprep.subr.mxu0 0.0
        %599 = vmatpush1.msra.mxu0 0.0
        %600 = vmatprep.subr.mxu0 0.0
        %601 = vmatpush1.msra.mxu0 0.0
        %602 = vmatprep.subr.mxu0 0.0
        %603 = vmatpush1.msra.mxu0 0.0
        %604 = vmatprep.subr.mxu0 0.0
        %605 = vmatpush1.msra.mxu0 0.0
        %606 = vmatprep.subr.mxu0 0.0
        %607 = vmatpush1.msra.mxu0 0.0
        %608 = vmatprep.subr.mxu0 0.0
        %609 = vmatpush1.msra.mxu0 0.0
        %610 = vmatprep.subr.mxu0 0.0
        %611 = vmatpush1.msra.mxu0 0.0
        %612 = vmatprep.subr.mxu0 0.0
        %613 = vmatpush1.msra.mxu0 0.0
        %614 = vmatprep.subr.mxu0 0.0
        %615 = vmatpush1.msra.mxu0 0.0
        %616 = vmatprep.subr.mxu0 0.0
        %617 = vmatpush1.msra.mxu0 0.0
        %618 = vmatprep.subr.mxu0 0.0
        %619 = vmatpush1.msra.mxu0 0.0
        %620 = vmatprep.subr.mxu0 0.0
        %621 = vmatpush1.msra.mxu0 0.0
        %622 = vmatprep.subr.mxu0 0.0
        %623 = vmatpush1.msra.mxu0 0.0
        %624 = vmatprep.subr.mxu0 0.0
        %625 = vmatpush1.msra.mxu0 0.0
        %626 = vmatprep.subr.mxu0 0.0
        %627 = vmatpush1.msra.mxu0 0.0
        %628 = vmatprep.subr.mxu0 0.0
        %629 = vmatpush1.msra.mxu0 0.0
        %630 = vmatprep.subr.mxu0 0.0
        %631 = vmatpush1.msra.mxu0 0.0
        %632 = vmatprep.subr.mxu0 0.0
        %633 = vmatpush1.msra.mxu0 0.0
        %634 = vmatprep.subr.mxu0 0.0
        %635 = vmatpush1.msra.mxu0 0.0
        %636 = vmatprep.subr.mxu0 0.0
        %637 = vmatpush1.msra.mxu0 0.0
        %638 = vmatprep.subr.mxu0 0.0
        %639 = vmatpush1.msra.mxu0 0.0
        %640 = vmatprep.subr.mxu0 0.0
        %641 = vmatpush1.msra.mxu0 0.0
        %642 = vmatprep.subr.mxu0 0.0
        %643 = vmatpush1.msra.mxu0 0.0
        %644 = vmatprep.subr.mxu0 0.0
        %645 = vmatpush1.msra.mxu0 0.0
        %646 = vmatprep.subr.mxu0 0.0
        %647 = vmatpush1.msra.mxu0 0.0
        %648 = vmatprep.subr.mxu0 0.0
        %649 = vmatpush1.msra.mxu0 0.0
        %650 = vmatprep.mubr.f32.mxu0 0.0
        %651 = vmatmul.mubr.f32.gmra.mrb[0].mxu0 %v559
        %v652 = vpop.f32.mrb[0].mxu0
        %v653 = vadd.f32 0.0, %v652
        %v654 = vpop.f32.mrb[0].mxu0
        %v655 = vadd.f32 0.0, %v654
        %656 = vmatprep.mubr.f32.mxu0 0.0
        %657 = vmatmul.mubr.f32.gmra.mrb[0].mxu0 %v562
        %v658 = vpop.f32.mrb[0].mxu0
        %v659 = vadd.f32 0.0, %v658
        %v660 = vpop.f32.mrb[0].mxu0
        %v661 = vadd.f32 0.0, %v660
        %662 = vmatprep.mubr.f32.mxu0 0.0
        %663 = vmatmul.mubr.f32.gmra.mrb[0].mxu0 %v565
        %v664 = vpop.f32.mrb[0].mxu0
        %v665 = vadd.f32 0.0, %v664
        %v666 = vpop.f32.mrb[0].mxu0
        %v667 = vadd.f32 0.0, %v666
        %668 = vmatprep.mubr.f32.mxu0 0.0
        %669 = vmatmul.mubr.f32.gmra.mrb[0].mxu0 %v568
        %v670 = vpop.f32.mrb[0].mxu0
        %v671 = vadd.f32 0.0, %v670
        %v672 = vpop.f32.mrb[0].mxu0
        %v673 = vadd.f32 0.0, %v672
        %674 = vmatprep.mubr.f32.mxu0 0.0
        %675 = vmatmul.mubr.f32.gmra.mrb[0].mxu0 %v571
        %v676 = vpop.f32.mrb[0].mxu0
        %v677 = vadd.f32 0.0, %v676
        %v678 = vpop.f32.mrb[0].mxu0
        %v679 = vadd.f32 0.0, %v678
        %680 = vmatprep.mubr.f32.mxu0 0.0
        %681 = vmatmul.mubr.f32.gmra.mrb[0].mxu0 %v574
        %v682 = vpop.f32.mrb[0].mxu0
        %v683 = vadd.f32 0.0, %v682
        %v684 = vpop.f32.mrb[0].mxu0
        %v685 = vadd.f32 0.0, %v684
        %686 = vmatprep.mubr.f32.mxu0 0.0
        %687 = vmatmul.mubr.f32.gmra.mrb[0].mxu0 %v577
        %v688 = vpop.f32.mrb[0].mxu0
        %v689 = vadd.f32 0.0, %v688
        %v690 = vpop.f32.mrb[0].mxu0
        %v691 = vadd.f32 0.0, %v690
        %692 = vmatprep.mubr.f32.mxu0 0.0
        %693 = vmatmul.mubr.f32.gmra.mrb[0].mxu0 %v580
        %v694 = vpop.f32.mrb[0].mxu0
        %v695 = vadd.f32 0.0, %v694
        %v696 = vpop.f32.mrb[0].mxu0
        %v697 = vadd.f32 0.0, %v696
        %698 = vdwg.mxu0
        %v699 = vadd.f32 %v484, %v653
        %v700 = vadd.f32 %v486, %v655
        %v701 = vadd.f32 %v490, %v659
        %v702 = vadd.f32 %v492, %v661
        %v703 = vadd.f32 %v496, %v665
        %v704 = vadd.f32 %v498, %v667
        %v705 = vadd.f32 %v502, %v671
        %v706 = vadd.f32 %v504, %v673
        %v707 = vadd.f32 %v508, %v677
        %v708 = vadd.f32 %v510, %v679
        %v709 = vadd.f32 %v514, %v683
        %v710 = vadd.f32 %v516, %v685
        %v711 = vadd.f32 %v520, %v689
        %v712 = vadd.f32 %v522, %v691
        %v713 = vadd.f32 %v526, %v695
        %v714 = vadd.f32 %v528, %v697
        %v715 = vld [vmem:[%s2] sm:$0xff]
        %v716 = vld [vmem:[%s2 + $0x8] sm:$0xff]
        %v717 = vld [vmem:[%s2 + $0x10] sm:$0xff]
        %v718 = vld [vmem:[%s2 + $0x18] sm:$0xff]
        %v719 = vld [vmem:[%s2 + $0x20] sm:$0xff]
        %v720 = vld [vmem:[%s2 + $0x28] sm:$0xff]
        %v721 = vld [vmem:[%s2 + $0x30] sm:$0xff]
        %v722 = vld [vmem:[%s2 + $0x38] sm:$0xff]
        %724 = vset.pattern.permute.xlu0 0
        %725 = vperm.xlu0 %724, %v715
        %v726 = vpop.permute.xlu0 %725
        %729 = vset.pattern.permute.xlu0 0
        %730 = vperm.xlu0 %729, %v716
        %v731 = vpop.permute.xlu0 %730
        %734 = vset.pattern.permute.xlu0 0
        %735 = vperm.xlu0 %734, %v717
        %v736 = vpop.permute.xlu0 %735
        %739 = vset.pattern.permute.xlu0 0
        %740 = vperm.xlu0 %739, %v718
        %v741 = vpop.permute.xlu0 %740
        %744 = vset.pattern.permute.xlu0 0
        %745 = vperm.xlu0 %744, %v719
        %v746 = vpop.permute.xlu0 %745
        %749 = vset.pattern.permute.xlu0 0
        %750 = vperm.xlu0 %749, %v720
        %v751 = vpop.permute.xlu0 %750
        %754 = vset.pattern.permute.xlu0 0
        %755 = vperm.xlu0 %754, %v721
        %v756 = vpop.permute.xlu0 %755
        %759 = vset.pattern.permute.xlu0 0
        %760 = vperm.xlu0 %759, %v722
        %v761 = vpop.permute.xlu0 %760
        %v763 = vadd.f32 %v699, %v726
        %v764 = vadd.f32 %v700, %v726
        %v765 = vadd.f32 %v701, %v731
        %v766 = vadd.f32 %v702, %v731
        %v767 = vadd.f32 %v703, %v736
        %v768 = vadd.f32 %v704, %v736
        %v769 = vadd.f32 %v705, %v741
        %v770 = vadd.f32 %v706, %v741
        %v771 = vadd.f32 %v707, %v746
        %v772 = vadd.f32 %v708, %v746
        %v773 = vadd.f32 %v709, %v751
        %v774 = vadd.f32 %v710, %v751
        %v775 = vadd.f32 %v711, %v756
        %v776 = vadd.f32 %v712, %v756
        %v777 = vadd.f32 %v713, %v761
        %v778 = vadd.f32 %v714, %v761
        %v779 = vmax.f32 %v763, 0.0
        %v780 = vmax.f32 %v764, 0.0
        %v781 = vmax.f32 %v765, 0.0
        %v782 = vmax.f32 %v766, 0.0
        %v783 = vmax.f32 %v767, 0.0
        %v784 = vmax.f32 %v768, 0.0
        %v785 = vmax.f32 %v769, 0.0
        %v786 = vmax.f32 %v770, 0.0
        %v787 = vmax.f32 %v771, 0.0
        %v788 = vmax.f32 %v772, 0.0
        %v789 = vmax.f32 %v773, 0.0
        %v790 = vmax.f32 %v774, 0.0
        %v791 = vmax.f32 %v775, 0.0
        %v792 = vmax.f32 %v776, 0.0
        %v793 = vmax.f32 %v777, 0.0
        %v794 = vmax.f32 %v778, 0.0
        %v795 = vsub.f32 0.0, %v779
        %v796 = vsub.f32 0.0, %v780
        %v797 = vsub.f32 0.0, %v781
        %v798 = vsub.f32 0.0, %v782
        %v799 = vsub.f32 0.0, %v783
        %v800 = vsub.f32 0.0, %v784
        %v801 = vsub.f32 0.0, %v785
        %v802 = vsub.f32 0.0, %v786
        %v803 = vsub.f32 0.0, %v787
        %v804 = vsub.f32 0.0, %v788
        %v805 = vsub.f32 0.0, %v789
        %v806 = vsub.f32 0.0, %v790
        %v807 = vsub.f32 0.0, %v791
        %v808 = vsub.f32 0.0, %v792
        %v809 = vsub.f32 0.0, %v793
        %v810 = vsub.f32 0.0, %v794
        %v811 = vmul.f32 %v795, 1.442695
        %v812 = vpow.pop %v811
        %v813 = vmul.f32 %v796, 1.442695
        %v814 = vpow.pop %v813
        %v815 = vmul.f32 %v797, 1.442695
        %v816 = vpow.pop %v815
        %v817 = vmul.f32 %v798, 1.442695
        %v818 = vpow.pop %v817
        %v819 = vmul.f32 %v799, 1.442695
        %v820 = vpow.pop %v819
        %v821 = vmul.f32 %v800, 1.442695
        %v822 = vpow.pop %v821
        %v823 = vmul.f32 %v801, 1.442695
        %v824 = vpow.pop %v823
        %v825 = vmul.f32 %v802, 1.442695
        %v826 = vpow.pop %v825
        %v827 = vmul.f32 %v803, 1.442695
        %v828 = vpow.pop %v827
        %v829 = vmul.f32 %v804, 1.442695
        %v830 = vpow.pop %v829
        %v831 = vmul.f32 %v805, 1.442695
        %v832 = vpow.pop %v831
        %v833 = vmul.f32 %v806, 1.442695
        %v834 = vpow.pop %v833
        %v835 = vmul.f32 %v807, 1.442695
        %v836 = vpow.pop %v835
        %v837 = vmul.f32 %v808, 1.442695
        %v838 = vpow.pop %v837
        %v839 = vmul.f32 %v809, 1.442695
        %v840 = vpow.pop %v839
        %v841 = vmul.f32 %v810, 1.442695
        %v842 = vpow.pop %v841
        %v843 = vadd.f32 %v812, 1.0
        %v844 = vadd.f32 %v814, 1.0
        %v845 = vadd.f32 %v816, 1.0
        %v846 = vadd.f32 %v818, 1.0
        %v847 = vadd.f32 %v820, 1.0
        %v848 = vadd.f32 %v822, 1.0
        %v849 = vadd.f32 %v824, 1.0
        %v850 = vadd.f32 %v826, 1.0
        %v851 = vadd.f32 %v828, 1.0
        %v852 = vadd.f32 %v830, 1.0
        %v853 = vadd.f32 %v832, 1.0
        %v854 = vadd.f32 %v834, 1.0
        %v855 = vadd.f32 %v836, 1.0
        %v856 = vadd.f32 %v838, 1.0
        %v857 = vadd.f32 %v840, 1.0
        %v858 = vadd.f32 %v842, 1.0
        %v859 = vrcp.pop %v843
        %v860 = vrcp.pop %v844
        %v861 = vrcp.pop %v845
        %v862 = vrcp.pop %v846
        %v863 = vrcp.pop %v847
        %v864 = vrcp.pop %v848
        %v865 = vrcp.pop %v849
        %v866 = vrcp.pop %v850
        %v867 = vrcp.pop %v851
        %v868 = vrcp.pop %v852
        %v869 = vrcp.pop %v853
        %v870 = vrcp.pop %v854
        %v871 = vrcp.pop %v855
        %v872 = vrcp.pop %v856
        %v873 = vrcp.pop %v857
        %v874 = vrcp.pop %v858
        %v875 = vmul.f32 %v843, %v859
        %v876 = vmul.f32 %v844, %v860
        %v877 = vmul.f32 %v845, %v861
        %v878 = vmul.f32 %v846, %v862
        %v879 = vmul.f32 %v847, %v863
        %v880 = vmul.f32 %v848, %v864
        %v881 = vmul.f32 %v849, %v865
        %v882 = vmul.f32 %v850, %v866
        %v883 = vmul.f32 %v851, %v867
        %v884 = vmul.f32 %v852, %v868
        %v885 = vmul.f32 %v853, %v869
        %v886 = vmul.f32 %v854, %v870
        %v887 = vmul.f32 %v855, %v871
        %v888 = vmul.f32 %v856, %v872
        %v889 = vmul.f32 %v857, %v873
        %v890 = vmul.f32 %v858, %v874
        %v891 = vsub.f32 2.0, %v875
        %v892 = vsub.f32 2.0, %v876
        %v893 = vsub.f32 2.0, %v877
        %v894 = vsub.f32 2.0, %v878
        %v895 = vsub.f32 2.0, %v879
        %v896 = vsub.f32 2.0, %v880
        %v897 = vsub.f32 2.0, %v881
        %v898 = vsub.f32 2.0, %v882
        %v899 = vsub.f32 2.0, %v883
        %v900 = vsub.f32 2.0, %v884
        %v901 = vsub.f32 2.0, %v885
        %v902 = vsub.f32 2.0, %v886
        %v903 = vsub.f32 2.0, %v887
        %v904 = vsub.f32 2.0, %v888
        %v905 = vsub.f32 2.0, %v889
        %v906 = vsub.f32 2.0, %v890
        %v907 = vmul.f32 %v859, %v891
        %v908 = vmul.f32 %v860, %v892
        %v909 = vmul.f32 %v861, %v893
        %v910 = vmul.f32 %v862, %v894
        %v911 = vmul.f32 %v863, %v895
        %v912 = vmul.f32 %v864, %v896
        %v913 = vmul.f32 %v865, %v897
        %v914 = vmul.f32 %v866, %v898
        %v915 = vmul.f32 %v867, %v899
        %v916 = vmul.f32 %v868, %v900
        %v917 = vmul.f32 %v869, %v901
        %v918 = vmul.f32 %v870, %v902
        %v919 = vmul.f32 %v871, %v903
        %v920 = vmul.f32 %v872, %v904
        %v921 = vmul.f32 %v873, %v905
        %v922 = vmul.f32 %v874, %v906
        %923 = vst [vmem:[%s187] sm:$0xff] %v907
        %924 = vst [vmem:[%s187 + $0x8] sm:$0xff] %v908
        %925 = vst [vmem:[%s187 + $0x10] sm:$0xff] %v909
        %926 = vst [vmem:[%s187 + $0x18] sm:$0xff] %v910
        %927 = vst [vmem:[%s187 + $0x20] sm:$0xff] %v911
        %928 = vst [vmem:[%s187 + $0x28] sm:$0xff] %v912
        %929 = vst [vmem:[%s187 + $0x30] sm:$0xff] %v913
        %930 = vst [vmem:[%s187 + $0x38] sm:$0xff] %v914
        %931 = vst [vmem:[%s187 + $0x40] sm:$0xff] %v915
        %932 = vst [vmem:[%s187 + $0x48] sm:$0xff] %v916
        %933 = vst [vmem:[%s187 + $0x50] sm:$0xff] %v917
        %934 = vst [vmem:[%s187 + $0x58] sm:$0xff] %v918
        %935 = vst [vmem:[%s187 + $0x60] sm:$0xff] %v919
        %936 = vst [vmem:[%s187 + $0x68] sm:$0xff] %v920
        %937 = vst [vmem:[%s187 + $0x70] sm:$0xff] %v921
        %938 = vst [vmem:[%s187 + $0x78] sm:$0xff] %v922
        %s939 = sand.u32 %s109, 1
        %s940 = scalar_lea.sflag [#allocation3], %s939
        %s941 = sand.u32 %s109, 1
        %s942 = smul.addr %s941, 128
        %s943 = scalar_lea.vmem [#allocation2], %s942
        // Predicated region
        $region33: #{tpu_custom_call.1} parent=31 // pred_check
          %p944 = pneg %p119
        $region34: #{tpu_custom_call.1} parent=31 // pred_check_branch
          %946 = sbr.rel (%p944) target = $region36
        $region35: #{tpu_custom_call.1} parent=31 // pred_region
          %s947 = smul.u32 2, %s22
          %s949 = ssub.s32 2048, 2048
          %950 = vsyncadd %s940, %s949
          %s951 = smul.addr %s21, 16
          %s952 = sadd.s32 %s947, %s951
          %s953 = smul.addr %s952, 128
          %s954 = scalar_lea.hbm %s3, %s953
          %s955 = sshll.u32 %s943, 4
          %s956 = int_to_ptr.vmem [resolvable:$true] %s955
          %961 = dma.vmem_to_hbm [thread:$0]  %s956, 2048, %s954, %s940, 256, 256, 16
        $region36: #{tpu_custom_call.1} parent=31 // pred_fallthru
          _
      $region32: #{tpu_custom_call.1} parent=5 // pred_fallthru
        _
      %p962 = scmp.le.s32.totalorder 2, %s12
      // Predicated region
      $region37: #{tpu_custom_call.1} parent=5 // pred_check
        %p963 = pneg %p962
      $region38: #{tpu_custom_call.1} parent=5 // pred_check_branch
        %965 = sbr.rel (%p963) target = $region40
      $region39: #{tpu_custom_call.1} parent=5 // pred_region
        %s966 = ssub.s32 %s12, 2
        // Predicated region
        $region41: #{tpu_custom_call.1} parent=39 // pred_check
          %p967 = pneg %p125
        $region42: #{tpu_custom_call.1} parent=39 // pred_check_branch
          %969 = sbr.rel (%p967) target = $region44
        $region43: #{tpu_custom_call.1} parent=39 // pred_region
          %s970 = sand.u32 %s110, 1
          %s971 = scalar_lea.sflag [#allocation3], %s970
          %s972 = sand.u32 %s110, 1
          %s973 = smul.addr %s972, 128
          %s974 = scalar_lea.vmem [#allocation2], %s973
          %975 = dma.done %s971, 2048
        $region44: #{tpu_custom_call.1} parent=39 // pred_fallthru
          _
      $region40: #{tpu_custom_call.1} parent=5 // pred_fallthru
        _
    $region6: #{tpu_custom_call.1} parent=1 // loop_footer
      %s16 = sadd.s32 1, %s12
    $region7: #{tpu_custom_call.1} parent=1 // loop_footer_branch
      %11 = sbr.rel target = $region3
    $region8: #{tpu_custom_call.1} parent=1 // loop_exit
      _
    %976 = vsyncpa [#allocation3], 1
    %s977 = scalar_lea.sflag [#allocation3], 1
    %978 = vsyncpa %s977, 1

</llo_original>
